<compile_context>
chip_gen: v7x
topology: tpu7x:2x2x1
jax: 0.10.0
libtpu: 0.0.40
codegen_flags: <defaults>
</compile_context>

<pallas_src>
import functools

import jax
import jax.numpy as jnp
from jax import lax
from jax.experimental import pallas as pl
from jax.experimental.pallas import tpu as pltpu

BN_EPS = 1e-5


def _fused_kernel(gate_ref, x_ref, w_ref, gb_ref, o_ref, *, inv_p):
    # Fold sigmoid(SE gate) into the weight: (C_out, C_in) * (1, C_in) is a
    # cheap sublane broadcast and removes a full (C_in, P) VPU multiply.
    g = jax.nn.sigmoid(gate_ref[...].astype(jnp.float32))            # (1, C_in)
    w_s = w_ref[...].astype(jnp.float32) * g                         # (C_out, C_in)

    # 1x1 conv == matmul over the channel axis (MXU).
    y = jnp.dot(w_s, x_ref[...].astype(jnp.float32),
                preferred_element_type=jnp.float32)                  # (C_out, P)

    # One-pass BatchNorm statistics (training mode, biased variance) over the
    # true spatial extent; the block is unpadded so every column is valid.
    sum_y = jnp.sum(y, axis=1, keepdims=True)                        # (C_out, 1)
    sum_y2 = jnp.sum(y * y, axis=1, keepdims=True)                   # (C_out, 1)
    mean = sum_y * inv_p
    var = sum_y2 * inv_p - mean * mean

    gamma = gb_ref[:, 0:1]                                           # (C_out, 1)
    beta = gb_ref[:, 1:2]                                            # (C_out, 1)
    scale = gamma * lax.rsqrt(var + BN_EPS)
    shift = beta - mean * scale

    # Folded BN affine: one fused multiply-add over the (C_out, P) tile.
    o_ref[...] = (y * scale + shift).astype(o_ref.dtype)


def fused_se_conv_bn(x137, x141, conv_w, gamma, beta):
    """x137: (1, C_in, H, W), x141: (1, C_in, 1, 1), conv_w: (C_out, C_in, 1, 1)."""
    n, c_in, h, w = x137.shape
    c_out = conv_w.shape[0]
    p = n * h * w
    # TODO(synk): N > 1 needs a per-sample gate layout (grid over N); module spec is N == 1.
    assert n == 1, "kernel layout assumes batch size 1 (as in the source module)"

    # Pure reshapes for N == 1 (no HBM transpose / pad / slice passes).
    x2d = x137.reshape(c_in, p)
    gate2d = x141.reshape(1, c_in)
    w2d = conv_w.reshape(c_out, c_in)
    # Pack gamma/beta into a single tiny operand: fewer DMA descriptors.
    gb = jnp.stack([gamma.reshape(c_out), beta.reshape(c_out)], axis=1)  # (C_out, 2)

    kernel = functools.partial(_fused_kernel, inv_p=1.0 / float(p))

    # Advisory cost hint (kernel is HBM / dispatch-overhead bound).
    bytes_accessed = 4 * (c_in * p + c_out * c_in + c_out * p + c_in + 2 * c_out)
    cost = pl.CostEstimate(flops=2 * c_out * c_in * p,
                           transcendentals=c_in,
                           bytes_accessed=bytes_accessed)

    # Single grid step: no serial loop on single-TC chips, no duplicated x read
    # on v7x. Full-array blocks (block == array dims) keep everything unpadded.
    out2d = pl.pallas_call(
        kernel,
        out_shape=jax.ShapeDtypeStruct((c_out, p), jnp.float32),
        grid=(1,),
        in_specs=[
            pl.BlockSpec((1, c_in), lambda i: (0, 0)),        # gate
            pl.BlockSpec((c_in, p), lambda i: (0, 0)),        # x
            pl.BlockSpec((c_out, c_in), lambda i: (0, 0)),    # weight
            pl.BlockSpec((c_out, 2), lambda i: (0, 0)),       # [gamma|beta]
        ],
        out_specs=pl.BlockSpec((c_out, p), lambda i: (0, 0)),
        compiler_params=pltpu.CompilerParams(
            dimension_semantics=("arbitrary",)),
        cost_estimate=cost,
    )(gate2d, x2d, w2d, gb)

    # (C_out, P) -> (1, C_out, H, W): pure reshape, no data movement.
    return out2d.reshape(1, c_out, h, w)


def reference(x137, x141, conv_w, gamma, beta):
    x143 = x137 * jax.nn.sigmoid(x141)
    y = lax.conv_general_dilated(
        x143, conv_w, window_strides=(1, 1), padding="VALID",
        dimension_numbers=("NCHW", "OIHW", "NCHW"))
    mean = jnp.mean(y, axis=(0, 2, 3), keepdims=True)
    var = jnp.mean((y - mean) ** 2, axis=(0, 2, 3), keepdims=True)
    y_hat = (y - mean) / jnp.sqrt(var + BN_EPS)
    return gamma.reshape(1, -1, 1, 1) * y_hat + beta.reshape(1, -1, 1, 1)


if __name__ == "__main__":
    key = jax.random.PRNGKey(0)
    k1, k2, k3 = jax.random.split(key, 3)

    N, C_IN, C_OUT, H, W = 1, 672, 112, 14, 14

    x137 = jax.random.normal(k1, (N, C_IN, H, W), dtype=jnp.float32)
    x141 = jax.random.normal(k2, (N, C_IN, 1, 1), dtype=jnp.float32)
    # deterministic "kaiming-ish" init for the 1x1 conv weight (no bias)
    fan_in = C_IN
    conv_w = jax.random.uniform(k3, (C_OUT, C_IN, 1, 1), dtype=jnp.float32,
                                minval=-1.0, maxval=1.0) * (1.0 / jnp.sqrt(fan_in))
    gamma = jnp.ones((C_OUT,), dtype=jnp.float32)   # BatchNorm2d default affine init
    beta = jnp.zeros((C_OUT,), dtype=jnp.float32)

    out = fused_se_conv_bn(x137, x141, conv_w, gamma, beta)
    out = jax.block_until_ready(out)

    ref = jax.block_until_ready(reference(x137, x141, conv_w, gamma, beta))
    assert out.shape == (N, C_OUT, H, W)
    assert jnp.allclose(out, ref, atol=2e-4, rtol=2e-4), float(jnp.max(jnp.abs(out - ref)))

    print("KERNEL_OK")
</pallas_src>

<mosaic_0001>
module attributes {stable_mosaic.version = 11 : i64} {
  func.func @_fused_kernel(%arg0: i32, %arg1: memref<1x672xf32, #tpu.memory_space<vmem>>, %arg2: memref<672x196xf32, #tpu.memory_space<vmem>>, %arg3: memref<112x672xf32, #tpu.memory_space<vmem>>, %arg4: memref<112x2xf32, #tpu.memory_space<vmem>>, %arg5: memref<112x196xf32, #tpu.memory_space<vmem>>) attributes {dimension_semantics = [#tpu.dimension_semantics<arbitrary>], iteration_bounds = array<i64: 1>, scalar_prefetch = 0 : i64, scratch_operands = 0 : i64, tpu.core_type = #tpu.core_type<tc>, window_params = [{pipeline_mode = #tpu.pipeline_mode<synchronous>, transform_indices = @transform_0, window_bounds = array<i64: 1, 672>}, {pipeline_mode = #tpu.pipeline_mode<synchronous>, transform_indices = @transform_1, window_bounds = array<i64: 672, 196>}, {pipeline_mode = #tpu.pipeline_mode<synchronous>, transform_indices = @transform_2, window_bounds = array<i64: 112, 672>}, {pipeline_mode = #tpu.pipeline_mode<synchronous>, transform_indices = @transform_3, window_bounds = array<i64: 112, 2>}, {pipeline_mode = #tpu.pipeline_mode<synchronous>, transform_indices = @transform_4, window_bounds = array<i64: 112, 196>}]} {
    %c0 = arith.constant 0 : index
    %c0_0 = arith.constant 0 : index
    %0 = vector.load %arg1[%c0, %c0_0] : memref<1x672xf32, #tpu.memory_space<vmem>>, vector<1x672xf32>
    %1 = arith.negf %0 : vector<1x672xf32>
    %2 = math.exp %1 : vector<1x672xf32>
    %cst = arith.constant 1.000000e+00 : f32
    %3 = vector.broadcast %cst : f32 to vector<1x672xf32>
    %4 = arith.addf %3, %2 : vector<1x672xf32>
    %5 = arith.divf %3, %4 : vector<1x672xf32>
    %c0_1 = arith.constant 0 : index
    %c0_2 = arith.constant 0 : index
    %6 = vector.load %arg3[%c0_1, %c0_2] : memref<112x672xf32, #tpu.memory_space<vmem>>, vector<112x672xf32>
    %7 = vector.broadcast %5 : vector<1x672xf32> to vector<112x672xf32>
    %8 = arith.mulf %6, %7 : vector<112x672xf32>
    %c0_3 = arith.constant 0 : index
    %c0_4 = arith.constant 0 : index
    %9 = vector.load %arg2[%c0_3, %c0_4] : memref<672x196xf32, #tpu.memory_space<vmem>>, vector<672x196xf32>
    %cst_5 = arith.constant dense<0.000000e+00> : vector<112x196xf32>
    %10 = tpu.matmul %8, %9, %cst_5 {dimension_numbers = #tpu.dot_dimension_numbers<[1], [0], [0], [1], [0, 0, 1, 1], [], []>} : vector<112x672xf32>, vector<672x196xf32>, vector<112x196xf32> -> vector<112x196xf32>
    %cst_6 = arith.constant dense<0.000000e+00> : vector<112xf32>
    %11 = vector.multi_reduction <add>, %10, %cst_6 [1] : vector<112x196xf32> to vector<112xf32>
    %12 = vector.shape_cast %11 : vector<112xf32> to vector<112x1xf32>
    %13 = arith.mulf %10, %10 : vector<112x196xf32>
    %cst_7 = arith.constant dense<0.000000e+00> : vector<112xf32>
    %14 = vector.multi_reduction <add>, %13, %cst_7 [1] : vector<112x196xf32> to vector<112xf32>
    %15 = vector.shape_cast %14 : vector<112xf32> to vector<112x1xf32>
    %cst_8 = arith.constant 0.00510204071 : f32
    %16 = vector.broadcast %cst_8 : f32 to vector<112x1xf32>
    %17 = arith.mulf %12, %16 : vector<112x1xf32>
    %cst_9 = arith.constant 0.00510204071 : f32
    %18 = vector.broadcast %cst_9 : f32 to vector<112x1xf32>
    %19 = arith.mulf %15, %18 : vector<112x1xf32>
    %20 = arith.mulf %17, %17 : vector<112x1xf32>
    %21 = arith.subf %19, %20 : vector<112x1xf32>
    %c0_10 = arith.constant 0 : index
    %c0_11 = arith.constant 0 : index
    %22 = vector.load %arg4[%c0_10, %c0_11] : memref<112x2xf32, #tpu.memory_space<vmem>>, vector<112x1xf32>
    %c0_12 = arith.constant 0 : index
    %c1 = arith.constant 1 : index
    %23 = vector.load %arg4[%c0_12, %c1] : memref<112x2xf32, #tpu.memory_space<vmem>>, vector<112x1xf32>
    %cst_13 = arith.constant 9.99999974E-6 : f32
    %24 = vector.broadcast %cst_13 : f32 to vector<112x1xf32>
    %25 = arith.addf %21, %24 : vector<112x1xf32>
    %26 = math.rsqrt %25 : vector<112x1xf32>
    %27 = arith.mulf %22, %26 : vector<112x1xf32>
    %28 = arith.mulf %17, %27 : vector<112x1xf32>
    %29 = arith.subf %23, %28 : vector<112x1xf32>
    %30 = vector.broadcast %27 : vector<112x1xf32> to vector<112x196xf32>
    %31 = arith.mulf %10, %30 : vector<112x196xf32>
    %32 = vector.broadcast %29 : vector<112x1xf32> to vector<112x196xf32>
    %33 = arith.addf %31, %32 : vector<112x196xf32>
    %c0_14 = arith.constant 0 : index
    %c0_15 = arith.constant 0 : index
    %34 = vector.load %arg5[%c0_14, %c0_15] : memref<112x196xf32, #tpu.memory_space<vmem>>, vector<112x196xf32>
    tpu.vector_store %arg5[%c0_14, %c0_15], %33 {strides = array<i32>} : memref<112x196xf32, #tpu.memory_space<vmem>>, vector<112x196xf32>,
    return
  }
  func.func @transform_0(%arg0: i32) -> (i32, i32) {
    %c0_i32 = arith.constant 0 : i32
    %c0_i32_0 = arith.constant 0 : i32
    %c0_i32_1 = arith.constant 0 : i32
    return %c0_i32, %c0_i32_0 : i32, i32
  }
  func.func @transform_1(%arg0: i32) -> (i32, i32) {
    %c0_i32 = arith.constant 0 : i32
    %c0_i32_0 = arith.constant 0 : i32
    %c0_i32_1 = arith.constant 0 : i32
    return %c0_i32, %c0_i32_0 : i32, i32
  }
  func.func @transform_2(%arg0: i32) -> (i32, i32) {
    %c0_i32 = arith.constant 0 : i32
    %c0_i32_0 = arith.constant 0 : i32
    %c0_i32_1 = arith.constant 0 : i32
    return %c0_i32, %c0_i32_0 : i32, i32
  }
  func.func @transform_3(%arg0: i32) -> (i32, i32) {
    %c0_i32 = arith.constant 0 : i32
    %c0_i32_0 = arith.constant 0 : i32
    %c0_i32_1 = arith.constant 0 : i32
    return %c0_i32, %c0_i32_0 : i32, i32
  }
  func.func @transform_4(%arg0: i32) -> (i32, i32) {
    %c0_i32 = arith.constant 0 : i32
    %c0_i32_0 = arith.constant 0 : i32
    %c0_i32_1 = arith.constant 0 : i32
    return %c0_i32, %c0_i32_0 : i32, i32
  }
}

</mosaic_0001>

<llo_original>
// kernel: tpu_custom_call.1
$region0: #{tpu_custom_call.1}
  #allocation0 [shape = 'u32[]', space=smem, size = 0x4, offset = 0x4, fixed_abs, tag = 'smem constant byte address 0x4 - core index']
  #allocation1 [shape = 'u32[144,128]{1,0:T(1,128)}', space=vmem, size = 0x12000, scoped, tag = 'internal scratch']
  %s0 = inlined_call_operand.vmem [shape: f32[1,672], index: 0, kind: input, shape index: {}]
  %s1 = inlined_call_operand.vmem [shape: f32[672,196], index: 1, kind: input, shape index: {}]
  %s2 = inlined_call_operand.vmem [shape: f32[112,672], index: 2, kind: input, shape index: {}]
  %s3 = inlined_call_operand.vmem [shape: f32[112,2], index: 3, kind: input, shape index: {}]
  %s4 = inlined_call_operand.vmem [shape: f32[112,196], index: 4, kind: output, shape index: {}]
  %s5 = sld [smem:[#allocation0]]
  $region26: #{tpu_custom_call.1} parent=0
    _
  %s7 = ssub.s32 1, %s5
  %s8 = scalar_select 0, %s7, %s5
  // Predicated region
  $region2: #{tpu_custom_call.1} parent=0 // pred_check
    _
  $region3: #{tpu_custom_call.1} parent=0 // pred_check_branch
    %10 = sbr.rel (0) target = $region5
  $region4: #{tpu_custom_call.1} parent=0 // pred_region
    _
  $region5: #{tpu_custom_call.1} parent=0 // pred_fallthru
    _
  // Predicated region
  $region6: #{tpu_custom_call.1} parent=0 // pred_check
    _
  $region7: #{tpu_custom_call.1} parent=0 // pred_check_branch
    %12 = sbr.rel (0) target = $region9
  $region8: #{tpu_custom_call.1} parent=0 // pred_region
    _
  $region9: #{tpu_custom_call.1} parent=0 // pred_fallthru
    _
  // Predicated region
  $region10: #{tpu_custom_call.1} parent=0 // pred_check
    _
  $region11: #{tpu_custom_call.1} parent=0 // pred_check_branch
    %14 = sbr.rel (0) target = $region13
  $region12: #{tpu_custom_call.1} parent=0 // pred_region
    _
  $region13: #{tpu_custom_call.1} parent=0 // pred_fallthru
    _
  // Predicated region
  $region14: #{tpu_custom_call.1} parent=0 // pred_check
    _
  $region15: #{tpu_custom_call.1} parent=0 // pred_check_branch
    %16 = sbr.rel (0) target = $region17
  $region16: #{tpu_custom_call.1} parent=0 // pred_region
    _
  $region17: #{tpu_custom_call.1} parent=0 // pred_fallthru
    _
  %v17 = vld [vmem:[%s0] sm:$0x3f]
  %v18 = vxor.u32 %v17, 2147483648
  %v19 = vmul.f32 %v18, 1.442695
  %v20 = vpow.pop %v19
  %v21 = vadd.f32 %v20, 1.0
  %v22 = vrcp.pop %v21
  %v23 = vmul.f32 1.0, %v22
  %v24 = vld [vmem:[%s2] sm:$0xff]
  %v25 = vld [vmem:[%s2 + $0x8] sm:$0xff]
  %v26 = vld [vmem:[%s2 + $0x10] sm:$0xff]
  %v27 = vld [vmem:[%s2 + $0x18] sm:$0xff]
  %v28 = vld [vmem:[%s2 + $0x20] sm:$0xff]
  %v29 = vld [vmem:[%s2 + $0x28] sm:$0xff]
  %v30 = vld [vmem:[%s2 + $0x30] sm:$0xff]
  %v31 = vld [vmem:[%s2 + $0x38] sm:$0xff]
  %v32 = vld [vmem:[%s2 + $0x40] sm:$0xff]
  %v33 = vld [vmem:[%s2 + $0x48] sm:$0xff]
  %v34 = vld [vmem:[%s2 + $0x50] sm:$0xff]
  %v35 = vld [vmem:[%s2 + $0x58] sm:$0xff]
  %v36 = vld [vmem:[%s2 + $0x60] sm:$0xff]
  %v37 = vld [vmem:[%s2 + $0x68] sm:$0xff]
  %v38 = vld [vmem:[%s2 + $0x70] sm:$0xff]
  %v39 = vld [vmem:[%s2 + $0x78] sm:$0xff]
  %v40 = vld [vmem:[%s2 + $0x80] sm:$0xff]
  %v41 = vld [vmem:[%s2 + $0x88] sm:$0xff]
  %v42 = vld [vmem:[%s2 + $0x90] sm:$0xff]
  %v43 = vld [vmem:[%s2 + $0x98] sm:$0xff]
  %v44 = vld [vmem:[%s2 + $0xa0] sm:$0xff]
  %v45 = vld [vmem:[%s2 + $0xa8] sm:$0xff]
  %v46 = vld [vmem:[%s2 + $0xb0] sm:$0xff]
  %v47 = vld [vmem:[%s2 + $0xb8] sm:$0xff]
  %v48 = vld [vmem:[%s2 + $0xc0] sm:$0xff]
  %v49 = vld [vmem:[%s2 + $0xc8] sm:$0xff]
  %v50 = vld [vmem:[%s2 + $0xd0] sm:$0xff]
  %v51 = vld [vmem:[%s2 + $0xd8] sm:$0xff]
  %v52 = vld [vmem:[%s2 + $0xe0] sm:$0xff]
  %v53 = vld [vmem:[%s2 + $0xe8] sm:$0xff]
  %v54 = vld [vmem:[%s2 + $0xf0] sm:$0xff]
  %v55 = vld [vmem:[%s2 + $0xf8] sm:$0xff]
  %v56 = vld [vmem:[%s2 + $0x100] sm:$0xff]
  %v57 = vld [vmem:[%s2 + $0x108] sm:$0xff]
  %v58 = vld [vmem:[%s2 + $0x110] sm:$0xff]
  %v59 = vld [vmem:[%s2 + $0x118] sm:$0xff]
  %v60 = vld [vmem:[%s2 + $0x120] sm:$0xff]
  %v61 = vld [vmem:[%s2 + $0x128] sm:$0xff]
  %v62 = vld [vmem:[%s2 + $0x130] sm:$0xff]
  %v63 = vld [vmem:[%s2 + $0x138] sm:$0xff]
  %v64 = vld [vmem:[%s2 + $0x140] sm:$0xff]
  %v65 = vld [vmem:[%s2 + $0x148] sm:$0xff]
  %v66 = vld [vmem:[%s2 + $0x150] sm:$0xff]
  %v67 = vld [vmem:[%s2 + $0x158] sm:$0xff]
  %v68 = vld [vmem:[%s2 + $0x160] sm:$0xff]
  %v69 = vld [vmem:[%s2 + $0x168] sm:$0xff]
  %v70 = vld [vmem:[%s2 + $0x170] sm:$0xff]
  %v71 = vld [vmem:[%s2 + $0x178] sm:$0xff]
  %v72 = vld [vmem:[%s2 + $0x180] sm:$0xff]
  %v73 = vld [vmem:[%s2 + $0x188] sm:$0xff]
  %v74 = vld [vmem:[%s2 + $0x190] sm:$0xff]
  %v75 = vld [vmem:[%s2 + $0x198] sm:$0xff]
  %v76 = vld [vmem:[%s2 + $0x1a0] sm:$0xff]
  %v77 = vld [vmem:[%s2 + $0x1a8] sm:$0xff]
  %v78 = vld [vmem:[%s2 + $0x1b0] sm:$0xff]
  %v79 = vld [vmem:[%s2 + $0x1b8] sm:$0xff]
  %v80 = vld [vmem:[%s2 + $0x1c0] sm:$0xff]
  %v81 = vld [vmem:[%s2 + $0x1c8] sm:$0xff]
  %v82 = vld [vmem:[%s2 + $0x1d0] sm:$0xff]
  %v83 = vld [vmem:[%s2 + $0x1d8] sm:$0xff]
  %v84 = vld [vmem:[%s2 + $0x1e0] sm:$0xff]
  %v85 = vld [vmem:[%s2 + $0x1e8] sm:$0xff]
  %v86 = vld [vmem:[%s2 + $0x1f0] sm:$0xff]
  %v87 = vld [vmem:[%s2 + $0x1f8] sm:$0xff]
  %v88 = vld [vmem:[%s2 + $0x200] sm:$0xff]
  %v89 = vld [vmem:[%s2 + $0x208] sm:$0xff]
  %v90 = vld [vmem:[%s2 + $0x210] sm:$0xff]
  %v91 = vld [vmem:[%s2 + $0x218] sm:$0xff]
  %v92 = vld [vmem:[%s2 + $0x220] sm:$0xff]
  %v93 = vld [vmem:[%s2 + $0x228] sm:$0xff]
  %v94 = vld [vmem:[%s2 + $0x230] sm:$0xff]
  %v95 = vld [vmem:[%s2 + $0x238] sm:$0xff]
  %v96 = vld [vmem:[%s2 + $0x240] sm:$0xff]
  %v97 = vld [vmem:[%s2 + $0x248] sm:$0xff]
  %v98 = vld [vmem:[%s2 + $0x250] sm:$0xff]
  %v99 = vld [vmem:[%s2 + $0x258] sm:$0xff]
  %v100 = vld [vmem:[%s2 + $0x260] sm:$0xff]
  %v101 = vld [vmem:[%s2 + $0x268] sm:$0xff]
  %v102 = vld [vmem:[%s2 + $0x270] sm:$0xff]
  %v103 = vld [vmem:[%s2 + $0x278] sm:$0xff]
  %v104 = vld [vmem:[%s2 + $0x280] sm:$0xff]
  %v105 = vld [vmem:[%s2 + $0x288] sm:$0xff]
  %v106 = vld [vmem:[%s2 + $0x290] sm:$0xff]
  %v107 = vld [vmem:[%s2 + $0x298] sm:$0xff]
  %v109 = vlaneseq
  %v110 = vshrl.u32 %v109, 7
  %v111 = vsub.s32 0, %v110
  %v112 = vrot.slane %v23, %v111
  %v113 = vlaneseq
  %v114 = vshrl.u32 %v113, 7
  %v115 = vsub.s32 1, %v114
  %v116 = vrot.slane %v23, %v115
  %v117 = vlaneseq
  %v118 = vshrl.u32 %v117, 7
  %v119 = vsub.s32 2, %v118
  %v120 = vrot.slane %v23, %v119
  %v121 = vlaneseq
  %v122 = vshrl.u32 %v121, 7
  %v123 = vsub.s32 3, %v122
  %v124 = vrot.slane %v23, %v123
  %v125 = vlaneseq
  %v126 = vshrl.u32 %v125, 7
  %v127 = vsub.s32 4, %v126
  %v128 = vrot.slane %v23, %v127
  %v129 = vlaneseq
  %v130 = vshrl.u32 %v129, 7
  %v131 = vsub.s32 5, %v130
  %v132 = vrot.slane %v23, %v131
  %v139 = vmul.f32 %v24, %v112
  %v140 = vmul.f32 %v25, %v116
  %v141 = vmul.f32 %v26, %v120
  %v142 = vmul.f32 %v27, %v124
  %v143 = vmul.f32 %v28, %v128
  %v144 = vmul.f32 %v29, %v132
  %v145 = vmul.f32 %v30, %v112
  %v146 = vmul.f32 %v31, %v116
  %v147 = vmul.f32 %v32, %v120
  %v148 = vmul.f32 %v33, %v124
  %v149 = vmul.f32 %v34, %v128
  %v150 = vmul.f32 %v35, %v132
  %v151 = vmul.f32 %v36, %v112
  %v152 = vmul.f32 %v37, %v116
  %v153 = vmul.f32 %v38, %v120
  %v154 = vmul.f32 %v39, %v124
  %v155 = vmul.f32 %v40, %v128
  %v156 = vmul.f32 %v41, %v132
  %v157 = vmul.f32 %v42, %v112
  %v158 = vmul.f32 %v43, %v116
  %v159 = vmul.f32 %v44, %v120
  %v160 = vmul.f32 %v45, %v124
  %v161 = vmul.f32 %v46, %v128
  %v162 = vmul.f32 %v47, %v132
  %v163 = vmul.f32 %v48, %v112
  %v164 = vmul.f32 %v49, %v116
  %v165 = vmul.f32 %v50, %v120
  %v166 = vmul.f32 %v51, %v124
  %v167 = vmul.f32 %v52, %v128
  %v168 = vmul.f32 %v53, %v132
  %v169 = vmul.f32 %v54, %v112
  %v170 = vmul.f32 %v55, %v116
  %v171 = vmul.f32 %v56, %v120
  %v172 = vmul.f32 %v57, %v124
  %v173 = vmul.f32 %v58, %v128
  %v174 = vmul.f32 %v59, %v132
  %v175 = vmul.f32 %v60, %v112
  %v176 = vmul.f32 %v61, %v116
  %v177 = vmul.f32 %v62, %v120
  %v178 = vmul.f32 %v63, %v124
  %v179 = vmul.f32 %v64, %v128
  %v180 = vmul.f32 %v65, %v132
  %v181 = vmul.f32 %v66, %v112
  %v182 = vmul.f32 %v67, %v116
  %v183 = vmul.f32 %v68, %v120
  %v184 = vmul.f32 %v69, %v124
  %v185 = vmul.f32 %v70, %v128
  %v186 = vmul.f32 %v71, %v132
  %v187 = vmul.f32 %v72, %v112
  %v188 = vmul.f32 %v73, %v116
  %v189 = vmul.f32 %v74, %v120
  %v190 = vmul.f32 %v75, %v124
  %v191 = vmul.f32 %v76, %v128
  %v192 = vmul.f32 %v77, %v132
  %v193 = vmul.f32 %v78, %v112
  %v194 = vmul.f32 %v79, %v116
  %v195 = vmul.f32 %v80, %v120
  %v196 = vmul.f32 %v81, %v124
  %v197 = vmul.f32 %v82, %v128
  %v198 = vmul.f32 %v83, %v132
  %v199 = vmul.f32 %v84, %v112
  %v200 = vmul.f32 %v85, %v116
  %v201 = vmul.f32 %v86, %v120
  %v202 = vmul.f32 %v87, %v124
  %v203 = vmul.f32 %v88, %v128
  %v204 = vmul.f32 %v89, %v132
  %v205 = vmul.f32 %v90, %v112
  %v206 = vmul.f32 %v91, %v116
  %v207 = vmul.f32 %v92, %v120
  %v208 = vmul.f32 %v93, %v124
  %v209 = vmul.f32 %v94, %v128
  %v210 = vmul.f32 %v95, %v132
  %v211 = vmul.f32 %v96, %v112
  %v212 = vmul.f32 %v97, %v116
  %v213 = vmul.f32 %v98, %v120
  %v214 = vmul.f32 %v99, %v124
  %v215 = vmul.f32 %v100, %v128
  %v216 = vmul.f32 %v101, %v132
  %v217 = vmul.f32 %v102, %v112
  %v218 = vmul.f32 %v103, %v116
  %v219 = vmul.f32 %v104, %v120
  %v220 = vmul.f32 %v105, %v124
  %v221 = vmul.f32 %v106, %v128
  %v222 = vmul.f32 %v107, %v132
  %v223 = vld [vmem:[%s1] sm:$0xff]
  %v224 = vld [vmem:[%s1 + $0x8] sm:$0xff]
  %v225 = vld [vmem:[%s1 + $0x10] sm:$0xff]
  %v226 = vld [vmem:[%s1 + $0x18] sm:$0xff]
  %v227 = vld [vmem:[%s1 + $0x20] sm:$0xff]
  %v228 = vld [vmem:[%s1 + $0x28] sm:$0xff]
  %v229 = vld [vmem:[%s1 + $0x30] sm:$0xff]
  %v230 = vld [vmem:[%s1 + $0x38] sm:$0xff]
  %v231 = vld [vmem:[%s1 + $0x40] sm:$0xff]
  %v232 = vld [vmem:[%s1 + $0x48] sm:$0xff]
  %v233 = vld [vmem:[%s1 + $0x50] sm:$0xff]
  %v234 = vld [vmem:[%s1 + $0x58] sm:$0xff]
  %v235 = vld [vmem:[%s1 + $0x60] sm:$0xff]
  %v236 = vld [vmem:[%s1 + $0x68] sm:$0xff]
  %v237 = vld [vmem:[%s1 + $0x70] sm:$0xff]
  %v238 = vld [vmem:[%s1 + $0x78] sm:$0xff]
  %v239 = vld [vmem:[%s1 + $0x80] sm:$0xff]
  %v240 = vld [vmem:[%s1 + $0x88] sm:$0xff]
  %v241 = vld [vmem:[%s1 + $0x90] sm:$0xff]
  %v242 = vld [vmem:[%s1 + $0x98] sm:$0xff]
  %v243 = vld [vmem:[%s1 + $0xa0] sm:$0xff]
  %v244 = vld [vmem:[%s1 + $0xa8] sm:$0xff]
  %v245 = vld [vmem:[%s1 + $0xb0] sm:$0xff]
  %v246 = vld [vmem:[%s1 + $0xb8] sm:$0xff]
  %v247 = vld [vmem:[%s1 + $0xc0] sm:$0xff]
  %v248 = vld [vmem:[%s1 + $0xc8] sm:$0xff]
  %v249 = vld [vmem:[%s1 + $0xd0] sm:$0xff]
  %v250 = vld [vmem:[%s1 + $0xd8] sm:$0xff]
  %v251 = vld [vmem:[%s1 + $0xe0] sm:$0xff]
  %v252 = vld [vmem:[%s1 + $0xe8] sm:$0xff]
  %v253 = vld [vmem:[%s1 + $0xf0] sm:$0xff]
  %v254 = vld [vmem:[%s1 + $0xf8] sm:$0xff]
  %v255 = vld [vmem:[%s1 + $0x100] sm:$0xff]
  %v256 = vld [vmem:[%s1 + $0x108] sm:$0xff]
  %v257 = vld [vmem:[%s1 + $0x110] sm:$0xff]
  %v258 = vld [vmem:[%s1 + $0x118] sm:$0xff]
  %v259 = vld [vmem:[%s1 + $0x120] sm:$0xff]
  %v260 = vld [vmem:[%s1 + $0x128] sm:$0xff]
  %v261 = vld [vmem:[%s1 + $0x130] sm:$0xff]
  %v262 = vld [vmem:[%s1 + $0x138] sm:$0xff]
  %v263 = vld [vmem:[%s1 + $0x140] sm:$0xff]
  %v264 = vld [vmem:[%s1 + $0x148] sm:$0xff]
  %v265 = vld [vmem:[%s1 + $0x150] sm:$0xff]
  %v266 = vld [vmem:[%s1 + $0x158] sm:$0xff]
  %v267 = vld [vmem:[%s1 + $0x160] sm:$0xff]
  %v268 = vld [vmem:[%s1 + $0x168] sm:$0xff]
  %v269 = vld [vmem:[%s1 + $0x170] sm:$0xff]
  %v270 = vld [vmem:[%s1 + $0x178] sm:$0xff]
  %v271 = vld [vmem:[%s1 + $0x180] sm:$0xff]
  %v272 = vld [vmem:[%s1 + $0x188] sm:$0xff]
  %v273 = vld [vmem:[%s1 + $0x190] sm:$0xff]
  %v274 = vld [vmem:[%s1 + $0x198] sm:$0xff]
  %v275 = vld [vmem:[%s1 + $0x1a0] sm:$0xff]
  %v276 = vld [vmem:[%s1 + $0x1a8] sm:$0xff]
  %v277 = vld [vmem:[%s1 + $0x1b0] sm:$0xff]
  %v278 = vld [vmem:[%s1 + $0x1b8] sm:$0xff]
  %v279 = vld [vmem:[%s1 + $0x1c0] sm:$0xff]
  %v280 = vld [vmem:[%s1 + $0x1c8] sm:$0xff]
  %v281 = vld [vmem:[%s1 + $0x1d0] sm:$0xff]
  %v282 = vld [vmem:[%s1 + $0x1d8] sm:$0xff]
  %v283 = vld [vmem:[%s1 + $0x1e0] sm:$0xff]
  %v284 = vld [vmem:[%s1 + $0x1e8] sm:$0xff]
  %v285 = vld [vmem:[%s1 + $0x1f0] sm:$0xff]
  %v286 = vld [vmem:[%s1 + $0x1f8] sm:$0xff]
  %v287 = vld [vmem:[%s1 + $0x200] sm:$0xff]
  %v288 = vld [vmem:[%s1 + $0x208] sm:$0xff]
  %v289 = vld [vmem:[%s1 + $0x210] sm:$0xff]
  %v290 = vld [vmem:[%s1 + $0x218] sm:$0xff]
  %v291 = vld [vmem:[%s1 + $0x220] sm:$0xff]
  %v292 = vld [vmem:[%s1 + $0x228] sm:$0xff]
  %v293 = vld [vmem:[%s1 + $0x230] sm:$0xff]
  %v294 = vld [vmem:[%s1 + $0x238] sm:$0xff]
  %v295 = vld [vmem:[%s1 + $0x240] sm:$0xff]
  %v296 = vld [vmem:[%s1 + $0x248] sm:$0xff]
  %v297 = vld [vmem:[%s1 + $0x250] sm:$0xff]
  %v298 = vld [vmem:[%s1 + $0x258] sm:$0xff]
  %v299 = vld [vmem:[%s1 + $0x260] sm:$0xff]
  %v300 = vld [vmem:[%s1 + $0x268] sm:$0xff]
  %v301 = vld [vmem:[%s1 + $0x270] sm:$0xff]
  %v302 = vld [vmem:[%s1 + $0x278] sm:$0xff]
  %v303 = vld [vmem:[%s1 + $0x280] sm:$0xff]
  %v304 = vld [vmem:[%s1 + $0x288] sm:$0xff]
  %v305 = vld [vmem:[%s1 + $0x290] sm:$0xff]
  %v306 = vld [vmem:[%s1 + $0x298] sm:$0xff]
  %v307 = vld [vmem:[%s1 + $0x2a0] sm:$0xff]
  %v308 = vld [vmem:[%s1 + $0x2a8] sm:$0xff]
  %v309 = vld [vmem:[%s1 + $0x2b0] sm:$0xff]
  %v310 = vld [vmem:[%s1 + $0x2b8] sm:$0xff]
  %v311 = vld [vmem:[%s1 + $0x2c0] sm:$0xff]
  %v312 = vld [vmem:[%s1 + $0x2c8] sm:$0xff]
  %v313 = vld [vmem:[%s1 + $0x2d0] sm:$0xff]
  %v314 = vld [vmem:[%s1 + $0x2d8] sm:$0xff]
  %v315 = vld [vmem:[%s1 + $0x2e0] sm:$0xff]
  %v316 = vld [vmem:[%s1 + $0x2e8] sm:$0xff]
  %v317 = vld [vmem:[%s1 + $0x2f0] sm:$0xff]
  %v318 = vld [vmem:[%s1 + $0x2f8] sm:$0xff]
  %v319 = vld [vmem:[%s1 + $0x300] sm:$0xff]
  %v320 = vld [vmem:[%s1 + $0x308] sm:$0xff]
  %v321 = vld [vmem:[%s1 + $0x310] sm:$0xff]
  %v322 = vld [vmem:[%s1 + $0x318] sm:$0xff]
  %v323 = vld [vmem:[%s1 + $0x320] sm:$0xff]
  %v324 = vld [vmem:[%s1 + $0x328] sm:$0xff]
  %v325 = vld [vmem:[%s1 + $0x330] sm:$0xff]
  %v326 = vld [vmem:[%s1 + $0x338] sm:$0xff]
  %v327 = vld [vmem:[%s1 + $0x340] sm:$0xff]
  %v328 = vld [vmem:[%s1 + $0x348] sm:$0xff]
  %v329 = vld [vmem:[%s1 + $0x350] sm:$0xff]
  %v330 = vld [vmem:[%s1 + $0x358] sm:$0xff]
  %v331 = vld [vmem:[%s1 + $0x360] sm:$0xff]
  %v332 = vld [vmem:[%s1 + $0x368] sm:$0xff]
  %v333 = vld [vmem:[%s1 + $0x370] sm:$0xff]
  %v334 = vld [vmem:[%s1 + $0x378] sm:$0xff]
  %v335 = vld [vmem:[%s1 + $0x380] sm:$0xff]
  %v336 = vld [vmem:[%s1 + $0x388] sm:$0xff]
  %v337 = vld [vmem:[%s1 + $0x390] sm:$0xff]
  %v338 = vld [vmem:[%s1 + $0x398] sm:$0xff]
  %v339 = vld [vmem:[%s1 + $0x3a0] sm:$0xff]
  %v340 = vld [vmem:[%s1 + $0x3a8] sm:$0xff]
  %v341 = vld [vmem:[%s1 + $0x3b0] sm:$0xff]
  %v342 = vld [vmem:[%s1 + $0x3b8] sm:$0xff]
  %v343 = vld [vmem:[%s1 + $0x3c0] sm:$0xff]
  %v344 = vld [vmem:[%s1 + $0x3c8] sm:$0xff]
  %v345 = vld [vmem:[%s1 + $0x3d0] sm:$0xff]
  %v346 = vld [vmem:[%s1 + $0x3d8] sm:$0xff]
  %v347 = vld [vmem:[%s1 + $0x3e0] sm:$0xff]
  %v348 = vld [vmem:[%s1 + $0x3e8] sm:$0xff]
  %v349 = vld [vmem:[%s1 + $0x3f0] sm:$0xff]
  %v350 = vld [vmem:[%s1 + $0x3f8] sm:$0xff]
  %v351 = vld [vmem:[%s1 + $0x400] sm:$0xff]
  %v352 = vld [vmem:[%s1 + $0x408] sm:$0xff]
  %v353 = vld [vmem:[%s1 + $0x410] sm:$0xff]
  %v354 = vld [vmem:[%s1 + $0x418] sm:$0xff]
  %v355 = vld [vmem:[%s1 + $0x420] sm:$0xff]
  %v356 = vld [vmem:[%s1 + $0x428] sm:$0xff]
  %v357 = vld [vmem:[%s1 + $0x430] sm:$0xff]
  %v358 = vld [vmem:[%s1 + $0x438] sm:$0xff]
  %v359 = vld [vmem:[%s1 + $0x440] sm:$0xff]
  %v360 = vld [vmem:[%s1 + $0x448] sm:$0xff]
  %v361 = vld [vmem:[%s1 + $0x450] sm:$0xff]
  %v362 = vld [vmem:[%s1 + $0x458] sm:$0xff]
  %v363 = vld [vmem:[%s1 + $0x460] sm:$0xff]
  %v364 = vld [vmem:[%s1 + $0x468] sm:$0xff]
  %v365 = vld [vmem:[%s1 + $0x470] sm:$0xff]
  %v366 = vld [vmem:[%s1 + $0x478] sm:$0xff]
  %v367 = vld [vmem:[%s1 + $0x480] sm:$0xff]
  %v368 = vld [vmem:[%s1 + $0x488] sm:$0xff]
  %v369 = vld [vmem:[%s1 + $0x490] sm:$0xff]
  %v370 = vld [vmem:[%s1 + $0x498] sm:$0xff]
  %v371 = vld [vmem:[%s1 + $0x4a0] sm:$0xff]
  %v372 = vld [vmem:[%s1 + $0x4a8] sm:$0xff]
  %v373 = vld [vmem:[%s1 + $0x4b0] sm:$0xff]
  %v374 = vld [vmem:[%s1 + $0x4b8] sm:$0xff]
  %v375 = vld [vmem:[%s1 + $0x4c0] sm:$0xff]
  %v376 = vld [vmem:[%s1 + $0x4c8] sm:$0xff]
  %v377 = vld [vmem:[%s1 + $0x4d0] sm:$0xff]
  %v378 = vld [vmem:[%s1 + $0x4d8] sm:$0xff]
  %v379 = vld [vmem:[%s1 + $0x4e0] sm:$0xff]
  %v380 = vld [vmem:[%s1 + $0x4e8] sm:$0xff]
  %v381 = vld [vmem:[%s1 + $0x4f0] sm:$0xff]
  %v382 = vld [vmem:[%s1 + $0x4f8] sm:$0xff]
  %v383 = vld [vmem:[%s1 + $0x500] sm:$0xff]
  %v384 = vld [vmem:[%s1 + $0x508] sm:$0xff]
  %v385 = vld [vmem:[%s1 + $0x510] sm:$0xff]
  %v386 = vld [vmem:[%s1 + $0x518] sm:$0xff]
  %v387 = vld [vmem:[%s1 + $0x520] sm:$0xff]
  %v388 = vld [vmem:[%s1 + $0x528] sm:$0xff]
  %v389 = vld [vmem:[%s1 + $0x530] sm:$0xff]
  %v390 = vld [vmem:[%s1 + $0x538] sm:$0xff]
  %vm391 = vcmask 261120
  %v393 = vsel %vm391, %v144, 0
  %v396 = vsel %vm391, %v150, 0
  %v399 = vsel %vm391, %v156, 0
  %v402 = vsel %vm391, %v162, 0
  %v405 = vsel %vm391, %v168, 0
  %v408 = vsel %vm391, %v174, 0
  %v411 = vsel %vm391, %v180, 0
  %v414 = vsel %vm391, %v186, 0
  %v417 = vsel %vm391, %v192, 0
  %v420 = vsel %vm391, %v198, 0
  %v423 = vsel %vm391, %v204, 0
  %v426 = vsel %vm391, %v210, 0
  %v429 = vsel %vm391, %v216, 0
  %v432 = vsel %vm391, %v222, 0
  %434 = vmatprep.subr.mxu0 %v224
  %435 = vmatpush1.msra.mxu0 %v223
  %436 = vmatprep.subr.mxu0 %v226
  %437 = vmatpush1.msra.mxu0 %v225
  %438 = vmatprep.subr.mxu0 %v228
  %439 = vmatpush1.msra.mxu0 %v227
  %440 = vmatprep.subr.mxu0 %v230
  %441 = vmatpush1.msra.mxu0 %v229
  %442 = vmatprep.subr.mxu0 %v232
  %443 = vmatpush1.msra.mxu0 %v231
  %444 = vmatprep.subr.mxu0 %v234
  %445 = vmatpush1.msra.mxu0 %v233
  %446 = vmatprep.subr.mxu0 %v236
  %447 = vmatpush1.msra.mxu0 %v235
  %448 = vmatprep.subr.mxu0 %v238
  %449 = vmatpush1.msra.mxu0 %v237
  %450 = vmatprep.subr.mxu0 %v240
  %451 = vmatpush1.msra.mxu0 %v239
  %452 = vmatprep.subr.mxu0 %v242
  %453 = vmatpush1.msra.mxu0 %v241
  %454 = vmatprep.subr.mxu0 %v244
  %455 = vmatpush1.msra.mxu0 %v243
  %456 = vmatprep.subr.mxu0 %v246
  %457 = vmatpush1.msra.mxu0 %v245
  %458 = vmatprep.subr.mxu0 %v248
  %459 = vmatpush1.msra.mxu0 %v247
  %460 = vmatprep.subr.mxu0 %v250
  %461 = vmatpush1.msra.mxu0 %v249
  %462 = vmatprep.subr.mxu0 %v252
  %463 = vmatpush1.msra.mxu0 %v251
  %464 = vmatprep.subr.mxu0 %v254
  %465 = vmatpush1.msra.mxu0 %v253
  %466 = vmatprep.subr.mxu0 %v256
  %467 = vmatpush1.msra.mxu0 %v255
  %468 = vmatprep.subr.mxu0 %v258
  %469 = vmatpush1.msra.mxu0 %v257
  %470 = vmatprep.subr.mxu0 %v260
  %471 = vmatpush1.msra.mxu0 %v259
  %472 = vmatprep.subr.mxu0 %v262
  %473 = vmatpush1.msra.mxu0 %v261
  %474 = vmatprep.subr.mxu0 %v264
  %475 = vmatpush1.msra.mxu0 %v263
  %476 = vmatprep.subr.mxu0 %v266
  %477 = vmatpush1.msra.mxu0 %v265
  %478 = vmatprep.subr.mxu0 %v268
  %479 = vmatpush1.msra.mxu0 %v267
  %480 = vmatprep.subr.mxu0 %v270
  %481 = vmatpush1.msra.mxu0 %v269
  %482 = vmatprep.subr.mxu0 %v272
  %483 = vmatpush1.msra.mxu0 %v271
  %484 = vmatprep.subr.mxu0 %v274
  %485 = vmatpush1.msra.mxu0 %v273
  %486 = vmatprep.subr.mxu0 %v276
  %487 = vmatpush1.msra.mxu0 %v275
  %488 = vmatprep.subr.mxu0 %v278
  %489 = vmatpush1.msra.mxu0 %v277
  %490 = vmatprep.subr.mxu0 %v280
  %491 = vmatpush1.msra.mxu0 %v279
  %492 = vmatprep.subr.mxu0 %v282
  %493 = vmatpush1.msra.mxu0 %v281
  %494 = vmatprep.subr.mxu0 %v284
  %495 = vmatpush1.msra.mxu0 %v283
  %496 = vmatprep.subr.mxu0 %v286
  %497 = vmatpush1.msra.mxu0 %v285
  %498 = vmatprep.mubr.f32.mxu0 %v140
  %499 = vmatmul.mubr.f32.gmra.mrb[0].mxu0 %v139
  %v500 = vpop.f32.mrb[0].mxu0
  %v501 = vadd.f32 0.0, %v500
  %v502 = vpop.f32.mrb[0].mxu0
  %v503 = vadd.f32 0.0, %v502
  %504 = vmatprep.mubr.f32.mxu0 %v146
  %505 = vmatmul.mubr.f32.gmra.mrb[0].mxu0 %v145
  %v506 = vpop.f32.mrb[0].mxu0
  %v507 = vadd.f32 0.0, %v506
  %v508 = vpop.f32.mrb[0].mxu0
  %v509 = vadd.f32 0.0, %v508
  %510 = vmatprep.mubr.f32.mxu0 %v152
  %511 = vmatmul.mubr.f32.gmra.mrb[0].mxu0 %v151
  %v512 = vpop.f32.mrb[0].mxu0
  %v513 = vadd.f32 0.0, %v512
  %v514 = vpop.f32.mrb[0].mxu0
  %v515 = vadd.f32 0.0, %v514
  %516 = vmatprep.mubr.f32.mxu0 %v158
  %517 = vmatmul.mubr.f32.gmra.mrb[0].mxu0 %v157
  %v518 = vpop.f32.mrb[0].mxu0
  %v519 = vadd.f32 0.0, %v518
  %v520 = vpop.f32.mrb[0].mxu0
  %v521 = vadd.f32 0.0, %v520
  %522 = vmatprep.mubr.f32.mxu0 %v164
  %523 = vmatmul.mubr.f32.gmra.mrb[0].mxu0 %v163
  %v524 = vpop.f32.mrb[0].mxu0
  %v525 = vadd.f32 0.0, %v524
  %v526 = vpop.f32.mrb[0].mxu0
  %v527 = vadd.f32 0.0, %v526
  %528 = vmatprep.mubr.f32.mxu0 %v170
  %529 = vmatmul.mubr.f32.gmra.mrb[0].mxu0 %v169
  %v530 = vpop.f32.mrb[0].mxu0
  %v531 = vadd.f32 0.0, %v530
  %v532 = vpop.f32.mrb[0].mxu0
  %v533 = vadd.f32 0.0, %v532
  %534 = vmatprep.mubr.f32.mxu0 %v176
  %535 = vmatmul.mubr.f32.gmra.mrb[0].mxu0 %v175
  %v536 = vpop.f32.mrb[0].mxu0
  %v537 = vadd.f32 0.0, %v536
  %v538 = vpop.f32.mrb[0].mxu0
  %v539 = vadd.f32 0.0, %v538
  %540 = vmatprep.mubr.f32.mxu0 %v182
  %541 = vmatmul.mubr.f32.gmra.mrb[0].mxu0 %v181
  %v542 = vpop.f32.mrb[0].mxu0
  %v543 = vadd.f32 0.0, %v542
  %v544 = vpop.f32.mrb[0].mxu0
  %v545 = vadd.f32 0.0, %v544
  %546 = vmatprep.mubr.f32.mxu0 %v188
  %547 = vmatmul.mubr.f32.gmra.mrb[0].mxu0 %v187
  %v548 = vpop.f32.mrb[0].mxu0
  %v549 = vadd.f32 0.0, %v548
  %v550 = vpop.f32.mrb[0].mxu0
  %v551 = vadd.f32 0.0, %v550
  %552 = vmatprep.mubr.f32.mxu0 %v194
  %553 = vmatmul.mubr.f32.gmra.mrb[0].mxu0 %v193
  %v554 = vpop.f32.mrb[0].mxu0
  %v555 = vadd.f32 0.0, %v554
  %v556 = vpop.f32.mrb[0].mxu0
  %v557 = vadd.f32 0.0, %v556
  %558 = vmatprep.mubr.f32.mxu0 %v200
  %559 = vmatmul.mubr.f32.gmra.mrb[0].mxu0 %v199
  %v560 = vpop.f32.mrb[0].mxu0
  %v561 = vadd.f32 0.0, %v560
  %v562 = vpop.f32.mrb[0].mxu0
  %v563 = vadd.f32 0.0, %v562
  %564 = vmatprep.mubr.f32.mxu0 %v206
  %565 = vmatmul.mubr.f32.gmra.mrb[0].mxu0 %v205
  %v566 = vpop.f32.mrb[0].mxu0
  %v567 = vadd.f32 0.0, %v566
  %v568 = vpop.f32.mrb[0].mxu0
  %v569 = vadd.f32 0.0, %v568
  %570 = vmatprep.mubr.f32.mxu0 %v212
  %571 = vmatmul.mubr.f32.gmra.mrb[0].mxu0 %v211
  %v572 = vpop.f32.mrb[0].mxu0
  %v573 = vadd.f32 0.0, %v572
  %v574 = vpop.f32.mrb[0].mxu0
  %v575 = vadd.f32 0.0, %v574
  %576 = vmatprep.mubr.f32.mxu0 %v218
  %577 = vmatmul.mubr.f32.gmra.mrb[0].mxu0 %v217
  %v578 = vpop.f32.mrb[0].mxu0
  %v579 = vadd.f32 0.0, %v578
  %v580 = vpop.f32.mrb[0].mxu0
  %v581 = vadd.f32 0.0, %v580
  %582 = vdwg.mxu0
  %583 = vmatprep.subr.mxu0 %v288
  %584 = vmatpush1.msra.mxu0 %v287
  %585 = vmatprep.subr.mxu0 %v290
  %586 = vmatpush1.msra.mxu0 %v289
  %587 = vmatprep.subr.mxu0 %v292
  %588 = vmatpush1.msra.mxu0 %v291
  %589 = vmatprep.subr.mxu0 %v294
  %590 = vmatpush1.msra.mxu0 %v293
  %591 = vmatprep.subr.mxu0 %v296
  %592 = vmatpush1.msra.mxu0 %v295
  %593 = vmatprep.subr.mxu0 %v298
  %594 = vmatpush1.msra.mxu0 %v297
  %595 = vmatprep.subr.mxu0 %v300
  %596 = vmatpush1.msra.mxu0 %v299
  %597 = vmatprep.subr.mxu0 %v302
  %598 = vmatpush1.msra.mxu0 %v301
  %599 = vmatprep.subr.mxu0 %v304
  %600 = vmatpush1.msra.mxu0 %v303
  %601 = vmatprep.subr.mxu0 %v306
  %602 = vmatpush1.msra.mxu0 %v305
  %603 = vmatprep.subr.mxu0 %v308
  %604 = vmatpush1.msra.mxu0 %v307
  %605 = vmatprep.subr.mxu0 %v310
  %606 = vmatpush1.msra.mxu0 %v309
  %607 = vmatprep.subr.mxu0 %v312
  %608 = vmatpush1.msra.mxu0 %v311
  %609 = vmatprep.subr.mxu0 %v314
  %610 = vmatpush1.msra.mxu0 %v313
  %611 = vmatprep.subr.mxu0 %v316
  %612 = vmatpush1.msra.mxu0 %v315
  %613 = vmatprep.subr.mxu0 %v318
  %614 = vmatpush1.msra.mxu0 %v317
  %615 = vmatprep.subr.mxu0 %v320
  %616 = vmatpush1.msra.mxu0 %v319
  %617 = vmatprep.subr.mxu0 %v322
  %618 = vmatpush1.msra.mxu0 %v321
  %619 = vmatprep.subr.mxu0 %v324
  %620 = vmatpush1.msra.mxu0 %v323
  %621 = vmatprep.subr.mxu0 %v326
  %622 = vmatpush1.msra.mxu0 %v325
  %623 = vmatprep.subr.mxu0 %v328
  %624 = vmatpush1.msra.mxu0 %v327
  %625 = vmatprep.subr.mxu0 %v330
  %626 = vmatpush1.msra.mxu0 %v329
  %627 = vmatprep.subr.mxu0 %v332
  %628 = vmatpush1.msra.mxu0 %v331
  %629 = vmatprep.subr.mxu0 %v334
  %630 = vmatpush1.msra.mxu0 %v333
  %631 = vmatprep.subr.mxu0 %v336
  %632 = vmatpush1.msra.mxu0 %v335
  %633 = vmatprep.subr.mxu0 %v338
  %634 = vmatpush1.msra.mxu0 %v337
  %635 = vmatprep.subr.mxu0 %v340
  %636 = vmatpush1.msra.mxu0 %v339
  %637 = vmatprep.subr.mxu0 %v342
  %638 = vmatpush1.msra.mxu0 %v341
  %639 = vmatprep.subr.mxu0 %v344
  %640 = vmatpush1.msra.mxu0 %v343
  %641 = vmatprep.subr.mxu0 %v346
  %642 = vmatpush1.msra.mxu0 %v345
  %643 = vmatprep.subr.mxu0 %v348
  %644 = vmatpush1.msra.mxu0 %v347
  %645 = vmatprep.subr.mxu0 %v350
  %646 = vmatpush1.msra.mxu0 %v349
  %647 = vmatprep.mubr.f32.mxu0 %v142
  %648 = vmatmul.mubr.f32.gmra.mrb[0].mxu0 %v141
  %v649 = vpop.f32.mrb[0].mxu0
  %v650 = vadd.f32 %v501, %v649
  %v651 = vpop.f32.mrb[0].mxu0
  %v652 = vadd.f32 %v503, %v651
  %653 = vmatprep.mubr.f32.mxu0 %v148
  %654 = vmatmul.mubr.f32.gmra.mrb[0].mxu0 %v147
  %v655 = vpop.f32.mrb[0].mxu0
  %v656 = vadd.f32 %v507, %v655
  %v657 = vpop.f32.mrb[0].mxu0
  %v658 = vadd.f32 %v509, %v657
  %659 = vmatprep.mubr.f32.mxu0 %v154
  %660 = vmatmul.mubr.f32.gmra.mrb[0].mxu0 %v153
  %v661 = vpop.f32.mrb[0].mxu0
  %v662 = vadd.f32 %v513, %v661
  %v663 = vpop.f32.mrb[0].mxu0
  %v664 = vadd.f32 %v515, %v663
  %665 = vmatprep.mubr.f32.mxu0 %v160
  %666 = vmatmul.mubr.f32.gmra.mrb[0].mxu0 %v159
  %v667 = vpop.f32.mrb[0].mxu0
  %v668 = vadd.f32 %v519, %v667
  %v669 = vpop.f32.mrb[0].mxu0
  %v670 = vadd.f32 %v521, %v669
  %671 = vmatprep.mubr.f32.mxu0 %v166
  %672 = vmatmul.mubr.f32.gmra.mrb[0].mxu0 %v165
  %v673 = vpop.f32.mrb[0].mxu0
  %v674 = vadd.f32 %v525, %v673
  %v675 = vpop.f32.mrb[0].mxu0
  %v676 = vadd.f32 %v527, %v675
  %677 = vmatprep.mubr.f32.mxu0 %v172
  %678 = vmatmul.mubr.f32.gmra.mrb[0].mxu0 %v171
  %v679 = vpop.f32.mrb[0].mxu0
  %v680 = vadd.f32 %v531, %v679
  %v681 = vpop.f32.mrb[0].mxu0
  %v682 = vadd.f32 %v533, %v681
  %683 = vmatprep.mubr.f32.mxu0 %v178
  %684 = vmatmul.mubr.f32.gmra.mrb[0].mxu0 %v177
  %v685 = vpop.f32.mrb[0].mxu0
  %v686 = vadd.f32 %v537, %v685
  %v687 = vpop.f32.mrb[0].mxu0
  %v688 = vadd.f32 %v539, %v687
  %689 = vmatprep.mubr.f32.mxu0 %v184
  %690 = vmatmul.mubr.f32.gmra.mrb[0].mxu0 %v183
  %v691 = vpop.f32.mrb[0].mxu0
  %v692 = vadd.f32 %v543, %v691
  %v693 = vpop.f32.mrb[0].mxu0
  %v694 = vadd.f32 %v545, %v693
  %695 = vmatprep.mubr.f32.mxu0 %v190
  %696 = vmatmul.mubr.f32.gmra.mrb[0].mxu0 %v189
  %v697 = vpop.f32.mrb[0].mxu0
  %v698 = vadd.f32 %v549, %v697
  %v699 = vpop.f32.mrb[0].mxu0
  %v700 = vadd.f32 %v551, %v699
  %701 = vmatprep.mubr.f32.mxu0 %v196
  %702 = vmatmul.mubr.f32.gmra.mrb[0].mxu0 %v195
  %v703 = vpop.f32.mrb[0].mxu0
  %v704 = vadd.f32 %v555, %v703
  %v705 = vpop.f32.mrb[0].mxu0
  %v706 = vadd.f32 %v557, %v705
  %707 = vmatprep.mubr.f32.mxu0 %v202
  %708 = vmatmul.mubr.f32.gmra.mrb[0].mxu0 %v201
  %v709 = vpop.f32.mrb[0].mxu0
  %v710 = vadd.f32 %v561, %v709
  %v711 = vpop.f32.mrb[0].mxu0
  %v712 = vadd.f32 %v563, %v711
  %713 = vmatprep.mubr.f32.mxu0 %v208
  %714 = vmatmul.mubr.f32.gmra.mrb[0].mxu0 %v207
  %v715 = vpop.f32.mrb[0].mxu0
  %v716 = vadd.f32 %v567, %v715
  %v717 = vpop.f32.mrb[0].mxu0
  %v718 = vadd.f32 %v569, %v717
  %719 = vmatprep.mubr.f32.mxu0 %v214
  %720 = vmatmul.mubr.f32.gmra.mrb[0].mxu0 %v213
  %v721 = vpop.f32.mrb[0].mxu0
  %v722 = vadd.f32 %v573, %v721
  %v723 = vpop.f32.mrb[0].mxu0
  %v724 = vadd.f32 %v575, %v723
  %725 = vmatprep.mubr.f32.mxu0 %v220
  %726 = vmatmul.mubr.f32.gmra.mrb[0].mxu0 %v219
  %v727 = vpop.f32.mrb[0].mxu0
  %v728 = vadd.f32 %v579, %v727
  %v729 = vpop.f32.mrb[0].mxu0
  %v730 = vadd.f32 %v581, %v729
  %731 = vdwg.mxu0
  %732 = vmatprep.subr.mxu0 %v352
  %733 = vmatpush1.msra.mxu0 %v351
  %734 = vmatprep.subr.mxu0 %v354
  %735 = vmatpush1.msra.mxu0 %v353
  %736 = vmatprep.subr.mxu0 %v356
  %737 = vmatpush1.msra.mxu0 %v355
  %738 = vmatprep.subr.mxu0 %v358
  %739 = vmatpush1.msra.mxu0 %v357
  %740 = vmatprep.subr.mxu0 %v360
  %741 = vmatpush1.msra.mxu0 %v359
  %742 = vmatprep.subr.mxu0 %v362
  %743 = vmatpush1.msra.mxu0 %v361
  %744 = vmatprep.subr.mxu0 %v364
  %745 = vmatpush1.msra.mxu0 %v363
  %746 = vmatprep.subr.mxu0 %v366
  %747 = vmatpush1.msra.mxu0 %v365
  %748 = vmatprep.subr.mxu0 %v368
  %749 = vmatpush1.msra.mxu0 %v367
  %750 = vmatprep.subr.mxu0 %v370
  %751 = vmatpush1.msra.mxu0 %v369
  %752 = vmatprep.subr.mxu0 %v372
  %753 = vmatpush1.msra.mxu0 %v371
  %754 = vmatprep.subr.mxu0 %v374
  %755 = vmatpush1.msra.mxu0 %v373
  %756 = vmatprep.subr.mxu0 %v376
  %757 = vmatpush1.msra.mxu0 %v375
  %758 = vmatprep.subr.mxu0 %v378
  %759 = vmatpush1.msra.mxu0 %v377
  %760 = vmatprep.subr.mxu0 %v380
  %761 = vmatpush1.msra.mxu0 %v379
  %762 = vmatprep.subr.mxu0 %v382
  %763 = vmatpush1.msra.mxu0 %v381
  %764 = vmatprep.subr.mxu0 %v384
  %765 = vmatpush1.msra.mxu0 %v383
  %766 = vmatprep.subr.mxu0 %v386
  %767 = vmatpush1.msra.mxu0 %v385
  %768 = vmatprep.subr.mxu0 %v388
  %769 = vmatpush1.msra.mxu0 %v387
  %770 = vmatprep.subr.mxu0 %v390
  %771 = vmatpush1.msra.mxu0 %v389
  %772 = vmatprep.subr.mxu0 0.0
  %773 = vmatpush1.msra.mxu0 0.0
  %774 = vmatprep.subr.mxu0 0.0
  %775 = vmatpush1.msra.mxu0 0.0
  %776 = vmatprep.subr.mxu0 0.0
  %777 = vmatpush1.msra.mxu0 0.0
  %778 = vmatprep.subr.mxu0 0.0
  %779 = vmatpush1.msra.mxu0 0.0
  %780 = vmatprep.subr.mxu0 0.0
  %781 = vmatpush1.msra.mxu0 0.0
  %782 = vmatprep.subr.mxu0 0.0
  %783 = vmatpush1.msra.mxu0 0.0
  %784 = vmatprep.subr.mxu0 0.0
  %785 = vmatpush1.msra.mxu0 0.0
  %786 = vmatprep.subr.mxu0 0.0
  %787 = vmatpush1.msra.mxu0 0.0
  %788 = vmatprep.subr.mxu0 0.0
  %789 = vmatpush1.msra.mxu0 0.0
  %790 = vmatprep.subr.mxu0 0.0
  %791 = vmatpush1.msra.mxu0 0.0
  %792 = vmatprep.subr.mxu0 0.0
  %793 = vmatpush1.msra.mxu0 0.0
  %794 = vmatprep.subr.mxu0 0.0
  %795 = vmatpush1.msra.mxu0 0.0
  %796 = vmatprep.mubr.f32.mxu0 %v393
  %797 = vmatmul.mubr.f32.gmra.mrb[0].mxu0 %v143
  %v798 = vpop.f32.mrb[0].mxu0
  %v799 = vadd.f32 %v650, %v798
  %v800 = vpop.f32.mrb[0].mxu0
  %v801 = vadd.f32 %v652, %v800
  %802 = vmatprep.mubr.f32.mxu0 %v396
  %803 = vmatmul.mubr.f32.gmra.mrb[0].mxu0 %v149
  %v804 = vpop.f32.mrb[0].mxu0
  %v805 = vadd.f32 %v656, %v804
  %v806 = vpop.f32.mrb[0].mxu0
  %v807 = vadd.f32 %v658, %v806
  %808 = vmatprep.mubr.f32.mxu0 %v399
  %809 = vmatmul.mubr.f32.gmra.mrb[0].mxu0 %v155
  %v810 = vpop.f32.mrb[0].mxu0
  %v811 = vadd.f32 %v662, %v810
  %v812 = vpop.f32.mrb[0].mxu0
  %v813 = vadd.f32 %v664, %v812
  %814 = vmatprep.mubr.f32.mxu0 %v402
  %815 = vmatmul.mubr.f32.gmra.mrb[0].mxu0 %v161
  %v816 = vpop.f32.mrb[0].mxu0
  %v817 = vadd.f32 %v668, %v816
  %v818 = vpop.f32.mrb[0].mxu0
  %v819 = vadd.f32 %v670, %v818
  %820 = vmatprep.mubr.f32.mxu0 %v405
  %821 = vmatmul.mubr.f32.gmra.mrb[0].mxu0 %v167
  %v822 = vpop.f32.mrb[0].mxu0
  %v823 = vadd.f32 %v674, %v822
  %v824 = vpop.f32.mrb[0].mxu0
  %v825 = vadd.f32 %v676, %v824
  %826 = vmatprep.mubr.f32.mxu0 %v408
  %827 = vmatmul.mubr.f32.gmra.mrb[0].mxu0 %v173
  %v828 = vpop.f32.mrb[0].mxu0
  %v829 = vadd.f32 %v680, %v828
  %v830 = vpop.f32.mrb[0].mxu0
  %v831 = vadd.f32 %v682, %v830
  %832 = vmatprep.mubr.f32.mxu0 %v411
  %833 = vmatmul.mubr.f32.gmra.mrb[0].mxu0 %v179
  %v834 = vpop.f32.mrb[0].mxu0
  %v835 = vadd.f32 %v686, %v834
  %v836 = vpop.f32.mrb[0].mxu0
  %v837 = vadd.f32 %v688, %v836
  %838 = vmatprep.mubr.f32.mxu0 %v414
  %839 = vmatmul.mubr.f32.gmra.mrb[0].mxu0 %v185
  %v840 = vpop.f32.mrb[0].mxu0
  %v841 = vadd.f32 %v692, %v840
  %v842 = vpop.f32.mrb[0].mxu0
  %v843 = vadd.f32 %v694, %v842
  %844 = vmatprep.mubr.f32.mxu0 %v417
  %845 = vmatmul.mubr.f32.gmra.mrb[0].mxu0 %v191
  %v846 = vpop.f32.mrb[0].mxu0
  %v847 = vadd.f32 %v698, %v846
  %v848 = vpop.f32.mrb[0].mxu0
  %v849 = vadd.f32 %v700, %v848
  %850 = vmatprep.mubr.f32.mxu0 %v420
  %851 = vmatmul.mubr.f32.gmra.mrb[0].mxu0 %v197
  %v852 = vpop.f32.mrb[0].mxu0
  %v853 = vadd.f32 %v704, %v852
  %v854 = vpop.f32.mrb[0].mxu0
  %v855 = vadd.f32 %v706, %v854
  %856 = vmatprep.mubr.f32.mxu0 %v423
  %857 = vmatmul.mubr.f32.gmra.mrb[0].mxu0 %v203
  %v858 = vpop.f32.mrb[0].mxu0
  %v859 = vadd.f32 %v710, %v858
  %v860 = vpop.f32.mrb[0].mxu0
  %v861 = vadd.f32 %v712, %v860
  %862 = vmatprep.mubr.f32.mxu0 %v426
  %863 = vmatmul.mubr.f32.gmra.mrb[0].mxu0 %v209
  %v864 = vpop.f32.mrb[0].mxu0
  %v865 = vadd.f32 %v716, %v864
  %v866 = vpop.f32.mrb[0].mxu0
  %v867 = vadd.f32 %v718, %v866
  %868 = vmatprep.mubr.f32.mxu0 %v429
  %869 = vmatmul.mubr.f32.gmra.mrb[0].mxu0 %v215
  %v870 = vpop.f32.mrb[0].mxu0
  %v871 = vadd.f32 %v722, %v870
  %v872 = vpop.f32.mrb[0].mxu0
  %v873 = vadd.f32 %v724, %v872
  %874 = vmatprep.mubr.f32.mxu0 %v432
  %875 = vmatmul.mubr.f32.gmra.mrb[0].mxu0 %v221
  %v876 = vpop.f32.mrb[0].mxu0
  %v877 = vadd.f32 %v728, %v876
  %v878 = vpop.f32.mrb[0].mxu0
  %v879 = vadd.f32 %v730, %v878
  %880 = vdwg.mxu0
  %vm881 = vcmask 556032
  %v882 = vsel %vm881, %v801, 0.0
  %v883 = vadd.f32 %v799, %v882
  %884 = vadd.xlane.f32.xlu0 %v883
  %v885 = vpop.xlane.xlu0 %884
  %v886 = vsel %vm881, %v807, 0.0
  %v887 = vadd.f32 %v805, %v886
  %888 = vadd.xlane.f32.xlu0 %v887
  %v889 = vpop.xlane.xlu0 %888
  %v890 = vsel %vm881, %v813, 0.0
  %v891 = vadd.f32 %v811, %v890
  %892 = vadd.xlane.f32.xlu0 %v891
  %v893 = vpop.xlane.xlu0 %892
  %v894 = vsel %vm881, %v819, 0.0
  %v895 = vadd.f32 %v817, %v894
  %896 = vadd.xlane.f32.xlu0 %v895
  %v897 = vpop.xlane.xlu0 %896
  %v898 = vsel %vm881, %v825, 0.0
  %v899 = vadd.f32 %v823, %v898
  %900 = vadd.xlane.f32.xlu0 %v899
  %v901 = vpop.xlane.xlu0 %900
  %v902 = vsel %vm881, %v831, 0.0
  %v903 = vadd.f32 %v829, %v902
  %904 = vadd.xlane.f32.xlu0 %v903
  %v905 = vpop.xlane.xlu0 %904
  %v906 = vsel %vm881, %v837, 0.0
  %v907 = vadd.f32 %v835, %v906
  %908 = vadd.xlane.f32.xlu0 %v907
  %v909 = vpop.xlane.xlu0 %908
  %v910 = vsel %vm881, %v843, 0.0
  %v911 = vadd.f32 %v841, %v910
  %912 = vadd.xlane.f32.xlu0 %v911
  %v913 = vpop.xlane.xlu0 %912
  %v914 = vsel %vm881, %v849, 0.0
  %v915 = vadd.f32 %v847, %v914
  %916 = vadd.xlane.f32.xlu0 %v915
  %v917 = vpop.xlane.xlu0 %916
  %v918 = vsel %vm881, %v855, 0.0
  %v919 = vadd.f32 %v853, %v918
  %920 = vadd.xlane.f32.xlu0 %v919
  %v921 = vpop.xlane.xlu0 %920
  %v922 = vsel %vm881, %v861, 0.0
  %v923 = vadd.f32 %v859, %v922
  %924 = vadd.xlane.f32.xlu0 %v923
  %v925 = vpop.xlane.xlu0 %924
  %v926 = vsel %vm881, %v867, 0.0
  %v927 = vadd.f32 %v865, %v926
  %928 = vadd.xlane.f32.xlu0 %v927
  %v929 = vpop.xlane.xlu0 %928
  %v930 = vsel %vm881, %v873, 0.0
  %v931 = vadd.f32 %v871, %v930
  %932 = vadd.xlane.f32.xlu0 %v931
  %v933 = vpop.xlane.xlu0 %932
  %v934 = vsel %vm881, %v879, 0.0
  %v935 = vadd.f32 %v877, %v934
  %936 = vadd.xlane.f32.xlu0 %v935
  %v937 = vpop.xlane.xlu0 %936
  %v938 = vmul.f32 %v799, %v799
  %v939 = vmul.f32 %v801, %v801
  %v940 = vmul.f32 %v805, %v805
  %v941 = vmul.f32 %v807, %v807
  %v942 = vmul.f32 %v811, %v811
  %v943 = vmul.f32 %v813, %v813
  %v944 = vmul.f32 %v817, %v817
  %v945 = vmul.f32 %v819, %v819
  %v946 = vmul.f32 %v823, %v823
  %v947 = vmul.f32 %v825, %v825
  %v948 = vmul.f32 %v829, %v829
  %v949 = vmul.f32 %v831, %v831
  %v950 = vmul.f32 %v835, %v835
  %v951 = vmul.f32 %v837, %v837
  %v952 = vmul.f32 %v841, %v841
  %v953 = vmul.f32 %v843, %v843
  %v954 = vmul.f32 %v847, %v847
  %v955 = vmul.f32 %v849, %v849
  %v956 = vmul.f32 %v853, %v853
  %v957 = vmul.f32 %v855, %v855
  %v958 = vmul.f32 %v859, %v859
  %v959 = vmul.f32 %v861, %v861
  %v960 = vmul.f32 %v865, %v865
  %v961 = vmul.f32 %v867, %v867
  %v962 = vmul.f32 %v871, %v871
  %v963 = vmul.f32 %v873, %v873
  %v964 = vmul.f32 %v877, %v877
  %v965 = vmul.f32 %v879, %v879
  %v966 = vsel %vm881, %v939, 0.0
  %v967 = vadd.f32 %v938, %v966
  %968 = vadd.xlane.f32.xlu0 %v967
  %v969 = vpop.xlane.xlu0 %968
  %v970 = vsel %vm881, %v941, 0.0
  %v971 = vadd.f32 %v940, %v970
  %972 = vadd.xlane.f32.xlu0 %v971
  %v973 = vpop.xlane.xlu0 %972
  %v974 = vsel %vm881, %v943, 0.0
  %v975 = vadd.f32 %v942, %v974
  %976 = vadd.xlane.f32.xlu0 %v975
  %v977 = vpop.xlane.xlu0 %976
  %v978 = vsel %vm881, %v945, 0.0
  %v979 = vadd.f32 %v944, %v978
  %980 = vadd.xlane.f32.xlu0 %v979
  %v981 = vpop.xlane.xlu0 %980
  %v982 = vsel %vm881, %v947, 0.0
  %v983 = vadd.f32 %v946, %v982
  %984 = vadd.xlane.f32.xlu0 %v983
  %v985 = vpop.xlane.xlu0 %984
  %v986 = vsel %vm881, %v949, 0.0
  %v987 = vadd.f32 %v948, %v986
  %988 = vadd.xlane.f32.xlu0 %v987
  %v989 = vpop.xlane.xlu0 %988
  %v990 = vsel %vm881, %v951, 0.0
  %v991 = vadd.f32 %v950, %v990
  %992 = vadd.xlane.f32.xlu0 %v991
  %v993 = vpop.xlane.xlu0 %992
  %v994 = vsel %vm881, %v953, 0.0
  %v995 = vadd.f32 %v952, %v994
  %996 = vadd.xlane.f32.xlu0 %v995
  %v997 = vpop.xlane.xlu0 %996
  %v998 = vsel %vm881, %v955, 0.0
  %v999 = vadd.f32 %v954, %v998
  %1000 = vadd.xlane.f32.xlu0 %v999
  %v1001 = vpop.xlane.xlu0 %1000
  %v1002 = vsel %vm881, %v957, 0.0
  %v1003 = vadd.f32 %v956, %v1002
  %1004 = vadd.xlane.f32.xlu0 %v1003
  %v1005 = vpop.xlane.xlu0 %1004
  %v1006 = vsel %vm881, %v959, 0.0
  %v1007 = vadd.f32 %v958, %v1006
  %1008 = vadd.xlane.f32.xlu0 %v1007
  %v1009 = vpop.xlane.xlu0 %1008
  %v1010 = vsel %vm881, %v961, 0.0
  %v1011 = vadd.f32 %v960, %v1010
  %1012 = vadd.xlane.f32.xlu0 %v1011
  %v1013 = vpop.xlane.xlu0 %1012
  %v1014 = vsel %vm881, %v963, 0.0
  %v1015 = vadd.f32 %v962, %v1014
  %1016 = vadd.xlane.f32.xlu0 %v1015
  %v1017 = vpop.xlane.xlu0 %1016
  %v1018 = vsel %vm881, %v965, 0.0
  %v1019 = vadd.f32 %v964, %v1018
  %1020 = vadd.xlane.f32.xlu0 %v1019
  %v1021 = vpop.xlane.xlu0 %1020
  %v1022 = vmul.f32 %v885, 0.0051020407
  %v1023 = vmul.f32 %v889, 0.0051020407
  %v1024 = vmul.f32 %v893, 0.0051020407
  %v1025 = vmul.f32 %v897, 0.0051020407
  %v1026 = vmul.f32 %v901, 0.0051020407
  %v1027 = vmul.f32 %v905, 0.0051020407
  %v1028 = vmul.f32 %v909, 0.0051020407
  %v1029 = vmul.f32 %v913, 0.0051020407
  %v1030 = vmul.f32 %v917, 0.0051020407
  %v1031 = vmul.f32 %v921, 0.0051020407
  %v1032 = vmul.f32 %v925, 0.0051020407
  %v1033 = vmul.f32 %v929, 0.0051020407
  %v1034 = vmul.f32 %v933, 0.0051020407
  %v1035 = vmul.f32 %v937, 0.0051020407
  %v1036 = vmul.f32 %v969, 0.0051020407
  %v1037 = vmul.f32 %v973, 0.0051020407
  %v1038 = vmul.f32 %v977, 0.0051020407
  %v1039 = vmul.f32 %v981, 0.0051020407
  %v1040 = vmul.f32 %v985, 0.0051020407
  %v1041 = vmul.f32 %v989, 0.0051020407
  %v1042 = vmul.f32 %v993, 0.0051020407
  %v1043 = vmul.f32 %v997, 0.0051020407
  %v1044 = vmul.f32 %v1001, 0.0051020407
  %v1045 = vmul.f32 %v1005, 0.0051020407
  %v1046 = vmul.f32 %v1009, 0.0051020407
  %v1047 = vmul.f32 %v1013, 0.0051020407
  %v1048 = vmul.f32 %v1017, 0.0051020407
  %v1049 = vmul.f32 %v1021, 0.0051020407
  %v1050 = vmul.f32 %v1022, %v1022
  %v1051 = vmul.f32 %v1023, %v1023
  %v1052 = vmul.f32 %v1024, %v1024
  %v1053 = vmul.f32 %v1025, %v1025
  %v1054 = vmul.f32 %v1026, %v1026
  %v1055 = vmul.f32 %v1027, %v1027
  %v1056 = vmul.f32 %v1028, %v1028
  %v1057 = vmul.f32 %v1029, %v1029
  %v1058 = vmul.f32 %v1030, %v1030
  %v1059 = vmul.f32 %v1031, %v1031
  %v1060 = vmul.f32 %v1032, %v1032
  %v1061 = vmul.f32 %v1033, %v1033
  %v1062 = vmul.f32 %v1034, %v1034
  %v1063 = vmul.f32 %v1035, %v1035
  %v1064 = vsub.f32 %v1036, %v1050
  %v1065 = vsub.f32 %v1037, %v1051
  %v1066 = vsub.f32 %v1038, %v1052
  %v1067 = vsub.f32 %v1039, %v1053
  %v1068 = vsub.f32 %v1040, %v1054
  %v1069 = vsub.f32 %v1041, %v1055
  %v1070 = vsub.f32 %v1042, %v1056
  %v1071 = vsub.f32 %v1043, %v1057
  %v1072 = vsub.f32 %v1044, %v1058
  %v1073 = vsub.f32 %v1045, %v1059
  %v1074 = vsub.f32 %v1046, %v1060
  %v1075 = vsub.f32 %v1047, %v1061
  %v1076 = vsub.f32 %v1048, %v1062
  %v1077 = vsub.f32 %v1049, %v1063
  %v1078 = vld [vmem:[%s3] sm:$0xff]
  %v1079 = vld [vmem:[%s3 + $0x8] sm:$0xff]
  %v1080 = vld [vmem:[%s3 + $0x10] sm:$0xff]
  %v1081 = vld [vmem:[%s3 + $0x18] sm:$0xff]
  %v1082 = vld [vmem:[%s3 + $0x20] sm:$0xff]
  %v1083 = vld [vmem:[%s3 + $0x28] sm:$0xff]
  %v1084 = vld [vmem:[%s3 + $0x30] sm:$0xff]
  %v1085 = vld [vmem:[%s3 + $0x38] sm:$0xff]
  %v1086 = vld [vmem:[%s3 + $0x40] sm:$0xff]
  %v1087 = vld [vmem:[%s3 + $0x48] sm:$0xff]
  %v1088 = vld [vmem:[%s3 + $0x50] sm:$0xff]
  %v1089 = vld [vmem:[%s3 + $0x58] sm:$0xff]
  %v1090 = vld [vmem:[%s3 + $0x60] sm:$0xff]
  %v1091 = vld [vmem:[%s3 + $0x68] sm:$0xff]
  %v1092 = vadd.f32 %v1064, 1e-05
  %v1093 = vadd.f32 %v1065, 1e-05
  %v1094 = vadd.f32 %v1066, 1e-05
  %v1095 = vadd.f32 %v1067, 1e-05
  %v1096 = vadd.f32 %v1068, 1e-05
  %v1097 = vadd.f32 %v1069, 1e-05
  %v1098 = vadd.f32 %v1070, 1e-05
  %v1099 = vadd.f32 %v1071, 1e-05
  %v1100 = vadd.f32 %v1072, 1e-05
  %v1101 = vadd.f32 %v1073, 1e-05
  %v1102 = vadd.f32 %v1074, 1e-05
  %v1103 = vadd.f32 %v1075, 1e-05
  %v1104 = vadd.f32 %v1076, 1e-05
  %v1105 = vadd.f32 %v1077, 1e-05
  %v1106 = vrsqrt.pop %v1092
  %v1107 = vrsqrt.pop %v1093
  %v1108 = vrsqrt.pop %v1094
  %v1109 = vrsqrt.pop %v1095
  %v1110 = vrsqrt.pop %v1096
  %v1111 = vrsqrt.pop %v1097
  %v1112 = vrsqrt.pop %v1098
  %v1113 = vrsqrt.pop %v1099
  %v1114 = vrsqrt.pop %v1100
  %v1115 = vrsqrt.pop %v1101
  %v1116 = vrsqrt.pop %v1102
  %v1117 = vrsqrt.pop %v1103
  %v1118 = vrsqrt.pop %v1104
  %v1119 = vrsqrt.pop %v1105
  %v1120 = vmul.f32 %v1078, %v1106
  %v1121 = vmul.f32 %v1079, %v1107
  %v1122 = vmul.f32 %v1080, %v1108
  %v1123 = vmul.f32 %v1081, %v1109
  %v1124 = vmul.f32 %v1082, %v1110
  %v1125 = vmul.f32 %v1083, %v1111
  %v1126 = vmul.f32 %v1084, %v1112
  %v1127 = vmul.f32 %v1085, %v1113
  %v1128 = vmul.f32 %v1086, %v1114
  %v1129 = vmul.f32 %v1087, %v1115
  %v1130 = vmul.f32 %v1088, %v1116
  %v1131 = vmul.f32 %v1089, %v1117
  %v1132 = vmul.f32 %v1090, %v1118
  %v1133 = vmul.f32 %v1091, %v1119
  %v1134 = vmul.f32 %v1022, %v1120
  %v1135 = vmul.f32 %v1023, %v1121
  %v1136 = vmul.f32 %v1024, %v1122
  %v1137 = vmul.f32 %v1025, %v1123
  %v1138 = vmul.f32 %v1026, %v1124
  %v1139 = vmul.f32 %v1027, %v1125
  %v1140 = vmul.f32 %v1028, %v1126
  %v1141 = vmul.f32 %v1029, %v1127
  %v1142 = vmul.f32 %v1030, %v1128
  %v1143 = vmul.f32 %v1031, %v1129
  %v1144 = vmul.f32 %v1032, %v1130
  %v1145 = vmul.f32 %v1033, %v1131
  %v1146 = vmul.f32 %v1034, %v1132
  %v1147 = vmul.f32 %v1035, %v1133
  %1162 = vrot.lane.b32.xlu0 %v1134, 1
  %v1163 = vpop.permute.xlu0 %1162
  %1164 = vrot.lane.b32.xlu0 %v1135, 1
  %v1165 = vpop.permute.xlu0 %1164
  %1166 = vrot.lane.b32.xlu0 %v1136, 1
  %v1167 = vpop.permute.xlu0 %1166
  %1168 = vrot.lane.b32.xlu0 %v1137, 1
  %v1169 = vpop.permute.xlu0 %1168
  %1170 = vrot.lane.b32.xlu0 %v1138, 1
  %v1171 = vpop.permute.xlu0 %1170
  %1172 = vrot.lane.b32.xlu0 %v1139, 1
  %v1173 = vpop.permute.xlu0 %1172
  %1174 = vrot.lane.b32.xlu0 %v1140, 1
  %v1175 = vpop.permute.xlu0 %1174
  %1176 = vrot.lane.b32.xlu0 %v1141, 1
  %v1177 = vpop.permute.xlu0 %1176
  %1178 = vrot.lane.b32.xlu0 %v1142, 1
  %v1179 = vpop.permute.xlu0 %1178
  %1180 = vrot.lane.b32.xlu0 %v1143, 1
  %v1181 = vpop.permute.xlu0 %1180
  %1182 = vrot.lane.b32.xlu0 %v1144, 1
  %v1183 = vpop.permute.xlu0 %1182
  %1184 = vrot.lane.b32.xlu0 %v1145, 1
  %v1185 = vpop.permute.xlu0 %1184
  %1186 = vrot.lane.b32.xlu0 %v1146, 1
  %v1187 = vpop.permute.xlu0 %1186
  %1188 = vrot.lane.b32.xlu0 %v1147, 1
  %v1189 = vpop.permute.xlu0 %1188
  %v1204 = vsub.f32 %v1078, %v1163
  %v1205 = vsub.f32 %v1079, %v1165
  %v1206 = vsub.f32 %v1080, %v1167
  %v1207 = vsub.f32 %v1081, %v1169
  %v1208 = vsub.f32 %v1082, %v1171
  %v1209 = vsub.f32 %v1083, %v1173
  %v1210 = vsub.f32 %v1084, %v1175
  %v1211 = vsub.f32 %v1085, %v1177
  %v1212 = vsub.f32 %v1086, %v1179
  %v1213 = vsub.f32 %v1087, %v1181
  %v1214 = vsub.f32 %v1088, %v1183
  %v1215 = vsub.f32 %v1089, %v1185
  %v1216 = vsub.f32 %v1090, %v1187
  %v1217 = vsub.f32 %v1091, %v1189
  %1219 = vset.pattern.permute.xlu0 0
  %1220 = vperm.xlu0 %1219, %v1120
  %v1221 = vpop.permute.xlu0 %1220
  %1224 = vset.pattern.permute.xlu0 0
  %1225 = vperm.xlu0 %1224, %v1121
  %v1226 = vpop.permute.xlu0 %1225
  %1229 = vset.pattern.permute.xlu0 0
  %1230 = vperm.xlu0 %1229, %v1122
  %v1231 = vpop.permute.xlu0 %1230
  %1234 = vset.pattern.permute.xlu0 0
  %1235 = vperm.xlu0 %1234, %v1123
  %v1236 = vpop.permute.xlu0 %1235
  %1239 = vset.pattern.permute.xlu0 0
  %1240 = vperm.xlu0 %1239, %v1124
  %v1241 = vpop.permute.xlu0 %1240
  %1244 = vset.pattern.permute.xlu0 0
  %1245 = vperm.xlu0 %1244, %v1125
  %v1246 = vpop.permute.xlu0 %1245
  %1249 = vset.pattern.permute.xlu0 0
  %1250 = vperm.xlu0 %1249, %v1126
  %v1251 = vpop.permute.xlu0 %1250
  %1254 = vset.pattern.permute.xlu0 0
  %1255 = vperm.xlu0 %1254, %v1127
  %v1256 = vpop.permute.xlu0 %1255
  %1259 = vset.pattern.permute.xlu0 0
  %1260 = vperm.xlu0 %1259, %v1128
  %v1261 = vpop.permute.xlu0 %1260
  %1264 = vset.pattern.permute.xlu0 0
  %1265 = vperm.xlu0 %1264, %v1129
  %v1266 = vpop.permute.xlu0 %1265
  %1269 = vset.pattern.permute.xlu0 0
  %1270 = vperm.xlu0 %1269, %v1130
  %v1271 = vpop.permute.xlu0 %1270
  %1274 = vset.pattern.permute.xlu0 0
  %1275 = vperm.xlu0 %1274, %v1131
  %v1276 = vpop.permute.xlu0 %1275
  %1279 = vset.pattern.permute.xlu0 0
  %1280 = vperm.xlu0 %1279, %v1132
  %v1281 = vpop.permute.xlu0 %1280
  %1284 = vset.pattern.permute.xlu0 0
  %1285 = vperm.xlu0 %1284, %v1133
  %v1286 = vpop.permute.xlu0 %1285
  %v1288 = vmul.f32 %v799, %v1221
  %v1289 = vmul.f32 %v801, %v1221
  %v1290 = vmul.f32 %v805, %v1226
  %v1291 = vmul.f32 %v807, %v1226
  %v1292 = vmul.f32 %v811, %v1231
  %v1293 = vmul.f32 %v813, %v1231
  %v1294 = vmul.f32 %v817, %v1236
  %v1295 = vmul.f32 %v819, %v1236
  %v1296 = vmul.f32 %v823, %v1241
  %v1297 = vmul.f32 %v825, %v1241
  %v1298 = vmul.f32 %v829, %v1246
  %v1299 = vmul.f32 %v831, %v1246
  %v1300 = vmul.f32 %v835, %v1251
  %v1301 = vmul.f32 %v837, %v1251
  %v1302 = vmul.f32 %v841, %v1256
  %v1303 = vmul.f32 %v843, %v1256
  %v1304 = vmul.f32 %v847, %v1261
  %v1305 = vmul.f32 %v849, %v1261
  %v1306 = vmul.f32 %v853, %v1266
  %v1307 = vmul.f32 %v855, %v1266
  %v1308 = vmul.f32 %v859, %v1271
  %v1309 = vmul.f32 %v861, %v1271
  %v1310 = vmul.f32 %v865, %v1276
  %v1311 = vmul.f32 %v867, %v1276
  %v1312 = vmul.f32 %v871, %v1281
  %v1313 = vmul.f32 %v873, %v1281
  %v1314 = vmul.f32 %v877, %v1286
  %v1315 = vmul.f32 %v879, %v1286
  %1317 = vset.pattern.permute.xlu0 1
  %1318 = vperm.xlu0 %1317, %v1204
  %v1319 = vpop.permute.xlu0 %1318
  %1322 = vset.pattern.permute.xlu0 1
  %1323 = vperm.xlu0 %1322, %v1205
  %v1324 = vpop.permute.xlu0 %1323
  %1327 = vset.pattern.permute.xlu0 1
  %1328 = vperm.xlu0 %1327, %v1206
  %v1329 = vpop.permute.xlu0 %1328
  %1332 = vset.pattern.permute.xlu0 1
  %1333 = vperm.xlu0 %1332, %v1207
  %v1334 = vpop.permute.xlu0 %1333
  %1337 = vset.pattern.permute.xlu0 1
  %1338 = vperm.xlu0 %1337, %v1208
  %v1339 = vpop.permute.xlu0 %1338
  %1342 = vset.pattern.permute.xlu0 1
  %1343 = vperm.xlu0 %1342, %v1209
  %v1344 = vpop.permute.xlu0 %1343
  %1347 = vset.pattern.permute.xlu0 1
  %1348 = vperm.xlu0 %1347, %v1210
  %v1349 = vpop.permute.xlu0 %1348
  %1352 = vset.pattern.permute.xlu0 1
  %1353 = vperm.xlu0 %1352, %v1211
  %v1354 = vpop.permute.xlu0 %1353
  %1357 = vset.pattern.permute.xlu0 1
  %1358 = vperm.xlu0 %1357, %v1212
  %v1359 = vpop.permute.xlu0 %1358
  %1362 = vset.pattern.permute.xlu0 1
  %1363 = vperm.xlu0 %1362, %v1213
  %v1364 = vpop.permute.xlu0 %1363
  %1367 = vset.pattern.permute.xlu0 1
  %1368 = vperm.xlu0 %1367, %v1214
  %v1369 = vpop.permute.xlu0 %1368
  %1372 = vset.pattern.permute.xlu0 1
  %1373 = vperm.xlu0 %1372, %v1215
  %v1374 = vpop.permute.xlu0 %1373
  %1377 = vset.pattern.permute.xlu0 1
  %1378 = vperm.xlu0 %1377, %v1216
  %v1379 = vpop.permute.xlu0 %1378
  %1382 = vset.pattern.permute.xlu0 1
  %1383 = vperm.xlu0 %1382, %v1217
  %v1384 = vpop.permute.xlu0 %1383
  %v1386 = vadd.f32 %v1288, %v1319
  %v1387 = vadd.f32 %v1289, %v1319
  %v1388 = vadd.f32 %v1290, %v1324
  %v1389 = vadd.f32 %v1291, %v1324
  %v1390 = vadd.f32 %v1292, %v1329
  %v1391 = vadd.f32 %v1293, %v1329
  %v1392 = vadd.f32 %v1294, %v1334
  %v1393 = vadd.f32 %v1295, %v1334
  %v1394 = vadd.f32 %v1296, %v1339
  %v1395 = vadd.f32 %v1297, %v1339
  %v1396 = vadd.f32 %v1298, %v1344
  %v1397 = vadd.f32 %v1299, %v1344
  %v1398 = vadd.f32 %v1300, %v1349
  %v1399 = vadd.f32 %v1301, %v1349
  %v1400 = vadd.f32 %v1302, %v1354
  %v1401 = vadd.f32 %v1303, %v1354
  %v1402 = vadd.f32 %v1304, %v1359
  %v1403 = vadd.f32 %v1305, %v1359
  %v1404 = vadd.f32 %v1306, %v1364
  %v1405 = vadd.f32 %v1307, %v1364
  %v1406 = vadd.f32 %v1308, %v1369
  %v1407 = vadd.f32 %v1309, %v1369
  %v1408 = vadd.f32 %v1310, %v1374
  %v1409 = vadd.f32 %v1311, %v1374
  %v1410 = vadd.f32 %v1312, %v1379
  %v1411 = vadd.f32 %v1313, %v1379
  %v1412 = vadd.f32 %v1314, %v1384
  %v1413 = vadd.f32 %v1315, %v1384
  %1414 = vst [vmem:[%s4] sm:$0xff] %v1386
  %1415 = vst.msk [vmem:[%s4 + $0x8] sm:$0xff] %vm881, %v1387
  %1416 = vst [vmem:[%s4 + $0x10] sm:$0xff] %v1388
  %1417 = vst.msk [vmem:[%s4 + $0x18] sm:$0xff] %vm881, %v1389
  %1418 = vst [vmem:[%s4 + $0x20] sm:$0xff] %v1390
  %1419 = vst.msk [vmem:[%s4 + $0x28] sm:$0xff] %vm881, %v1391
  %1420 = vst [vmem:[%s4 + $0x30] sm:$0xff] %v1392
  %1421 = vst.msk [vmem:[%s4 + $0x38] sm:$0xff] %vm881, %v1393
  %1422 = vst [vmem:[%s4 + $0x40] sm:$0xff] %v1394
  %1423 = vst.msk [vmem:[%s4 + $0x48] sm:$0xff] %vm881, %v1395
  %1424 = vst [vmem:[%s4 + $0x50] sm:$0xff] %v1396
  %1425 = vst.msk [vmem:[%s4 + $0x58] sm:$0xff] %vm881, %v1397
  %1426 = vst [vmem:[%s4 + $0x60] sm:$0xff] %v1398
  %1427 = vst.msk [vmem:[%s4 + $0x68] sm:$0xff] %vm881, %v1399
  %1428 = vst [vmem:[%s4 + $0x70] sm:$0xff] %v1400
  %1429 = vst.msk [vmem:[%s4 + $0x78] sm:$0xff] %vm881, %v1401
  %1430 = vst [vmem:[%s4 + $0x80] sm:$0xff] %v1402
  %1431 = vst.msk [vmem:[%s4 + $0x88] sm:$0xff] %vm881, %v1403
  %1432 = vst [vmem:[%s4 + $0x90] sm:$0xff] %v1404
  %1433 = vst.msk [vmem:[%s4 + $0x98] sm:$0xff] %vm881, %v1405
  %1434 = vst [vmem:[%s4 + $0xa0] sm:$0xff] %v1406
  %1435 = vst.msk [vmem:[%s4 + $0xa8] sm:$0xff] %vm881, %v1407
  %1436 = vst [vmem:[%s4 + $0xb0] sm:$0xff] %v1408
  %1437 = vst.msk [vmem:[%s4 + $0xb8] sm:$0xff] %vm881, %v1409
  %1438 = vst [vmem:[%s4 + $0xc0] sm:$0xff] %v1410
  %1439 = vst.msk [vmem:[%s4 + $0xc8] sm:$0xff] %vm881, %v1411
  %1440 = vst [vmem:[%s4 + $0xd0] sm:$0xff] %v1412
  %1441 = vst.msk [vmem:[%s4 + $0xd8] sm:$0xff] %vm881, %v1413
  // Predicated region
  $region18: #{tpu_custom_call.1} parent=0 // pred_check
    _
  $region19: #{tpu_custom_call.1} parent=0 // pred_check_branch
    %1443 = sbr.rel (0) target = $region21
  $region20: #{tpu_custom_call.1} parent=0 // pred_region
    _
  $region21: #{tpu_custom_call.1} parent=0 // pred_fallthru
    _
  // Predicated region
  $region22: #{tpu_custom_call.1} parent=0 // pred_check
    _
  $region23: #{tpu_custom_call.1} parent=0 // pred_check_branch
    %1445 = sbr.rel (0) target = $region25
  $region24: #{tpu_custom_call.1} parent=0 // pred_region
    _
  $region25: #{tpu_custom_call.1} parent=0 // pred_fallthru
    _

</llo_original>
